<compile_context>
chip_gen: v7x
topology: tpu7x:2x2x1
jax: 0.10.0
libtpu: 0.0.40
codegen_flags: <defaults>
</compile_context>

<pallas_src>
import functools

import jax
import jax.numpy as jnp
import numpy as np
from jax.experimental import pallas as pl
from jax.experimental.pallas import tpu as pltpu

_SUBLANE = 8    # batch rows per kernel tile (sublane axis)
_LANE = 128     # points padded to a multiple of the lane width


def _round_up(x, m):
    return ((x + m - 1) // m) * m


def _ifs_scan_kernel(dict_ref, idx_ref, pt0_ref, x_ref, y_ref, op_ref, *,
                     num_funcs, num_points):
    """One batch-chunk: gather per-step affine maps from the SMEM dictionary,
    compose them with a Hillis-Steele prefix scan along the lane (points) axis,
    then apply every prefix to the initial point."""
    idx = idx_ref[...]                                   # (8, NP_pad) int32
    shape = idx.shape

    zero = jnp.zeros(shape, jnp.float32)
    w00 = zero; w01 = zero; w10 = zero; w11 = zero
    b0 = zero; b1 = zero; op = zero

    # Fused dictionary gather (F is tiny): coeff[b, i] = dict[idx[b, i], c].
    for f in range(num_funcs):
        m = (idx == f).astype(jnp.float32)
        w00 = w00 + m * dict_ref[f, 0]
        w01 = w01 + m * dict_ref[f, 1]
        w10 = w10 + m * dict_ref[f, 2]
        w11 = w11 + m * dict_ref[f, 3]
        b0 = b0 + m * dict_ref[f, 4]
        b1 = b1 + m * dict_ref[f, 5]
        op = op + m * dict_ref[f, 6]

    lane = jax.lax.broadcasted_iota(jnp.int32, shape, 1)

    # Inclusive prefix scan of affine maps: P_i = A_i o A_{i-1} o ... o A_0.
    # Statically unrolled: ceil(log2(num_points)) lane-parallel rounds.
    d = 1
    while d < num_points:
        valid = lane >= d
        # Earlier-segment operand X = cur[i - d] (identity map where i < d).
        x00 = jnp.where(valid, pltpu.roll(w00, d, axis=1), 1.0)
        x01 = jnp.where(valid, pltpu.roll(w01, d, axis=1), 0.0)
        x10 = jnp.where(valid, pltpu.roll(w10, d, axis=1), 0.0)
        x11 = jnp.where(valid, pltpu.roll(w11, d, axis=1), 1.0)
        xb0 = jnp.where(valid, pltpu.roll(b0, d, axis=1), 0.0)
        xb1 = jnp.where(valid, pltpu.roll(b1, d, axis=1), 0.0)

        # new = Y o X  with Y = cur[i]:  W = W_Y W_X,  b = W_Y b_X + b_Y.
        n00 = w00 * x00 + w01 * x10
        n01 = w00 * x01 + w01 * x11
        n10 = w10 * x00 + w11 * x10
        n11 = w10 * x01 + w11 * x11
        nb0 = w00 * xb0 + w01 * xb1 + b0
        nb1 = w10 * xb0 + w11 * xb1 + b1
        w00, w01, w10, w11, b0, b1 = n00, n01, n10, n11, nb0, nb1
        d *= 2

    # Apply every prefix to point0; dense, pad-free lane stores.
    x0 = pt0_ref[:, 0:1]                                 # (8, 1) broadcasts over lanes
    y0 = pt0_ref[:, 1:2]
    x_ref[...] = w00 * x0 + w01 * y0 + b0
    y_ref[...] = w10 * x0 + w11 * y0 + b1
    op_ref[...] = op


def ifs_scan(dict_slab, idx, pt0, *, num_points):
    """dict_slab: (F, 8) f32; idx: (B_pad, NP_pad) int32; pt0: (B_pad, 2) f32
    -> x, y, op each (B_pad, NP_pad) f32."""
    B_pad, NP_pad = idx.shape
    nb = B_pad // _SUBLANE
    num_funcs = dict_slab.shape[0]

    kernel = functools.partial(_ifs_scan_kernel,
                               num_funcs=num_funcs, num_points=num_points)
    plane = jax.ShapeDtypeStruct((B_pad, NP_pad), jnp.float32)
    out_spec = pl.BlockSpec((_SUBLANE, NP_pad), lambda g: (g, 0))

    # VMEM footprint per step is a few (8, NP_pad) f32 tiles -> default limits are
    # ample on v5e/v6e/v7x at any reasonable num_points; no vmem_limit override.
    return pl.pallas_call(
        kernel,
        out_shape=(plane, plane, plane),
        grid_spec=pltpu.PrefetchScalarGridSpec(
            num_scalar_prefetch=0,
            grid=(nb,),
            in_specs=[
                pl.BlockSpec(memory_space=pltpu.MemorySpace.SMEM),   # dict (F, 8)
                pl.BlockSpec((_SUBLANE, NP_pad), lambda g: (g, 0)),  # sampled indices
                pl.BlockSpec((_SUBLANE, 2), lambda g: (g, 0)),       # initial points
            ],
            out_specs=(out_spec, out_spec, out_spec),
        ),
        compiler_params=pltpu.CompilerParams(
            # Batch chunks are independent -> sharded across TCs on v7x.
            dimension_semantics=("parallel",)),
    )(dict_slab, idx, pt0)


def sample_functions(key, code, num_points, model_batches):
    # TODO(synk): `sample_functions` is not defined in the source module; here we
    # treat `code` as per-model-batch categorical logits over the function dictionary.
    return jax.random.categorical(
        key, code[:, None, :], axis=-1, shape=(model_batches, num_points))


def parallel_ifs_forward(point, optimized_weights, optimized_biases,
                         optimized_function_ops, code, num_points,
                         model_batches, sample_key):
    B = model_batches
    F = optimized_weights.shape[0]
    index = sample_functions(sample_key, code, num_points, B)          # (B, num_points)

    # Tiny function dictionary -> (F, 8) SMEM slab: [w00 w01 w10 w11 b0 b1 op 0].
    dict_slab = jnp.concatenate([
        optimized_weights.reshape(F, 4).astype(jnp.float32),
        optimized_biases.reshape(F, 2).astype(jnp.float32),
        optimized_function_ops.reshape(F, 1).astype(jnp.float32),
        jnp.zeros((F, 1), jnp.float32),
    ], axis=1)

    # Pad batch to a sublane multiple and points to a lane multiple so every
    # kernel vector op / store is a dense tile (padded rows/lanes are discarded).
    B_pad = _round_up(B, _SUBLANE)
    NP_pad = _round_up(num_points, _LANE)
    idx_pad = jnp.zeros((B_pad, NP_pad), jnp.int32)
    idx_pad = idx_pad.at[:B, :num_points].set(index.astype(jnp.int32))
    pt0 = jnp.zeros((B_pad, 2), jnp.float32)
    pt0 = pt0.at[:B, :].set(point.reshape(B, 2).astype(jnp.float32))

    x, y, op = ifs_scan(dict_slab, idx_pad, pt0, num_points=num_points)

    # Back to the PyTorch convention: cat over iterations -> (num_points*B, 3),
    # then drop the first 51*B rows.
    pts = jnp.stack([x[:B, :num_points], y[:B, :num_points], op[:B, :num_points]],
                    axis=-1)                                           # (B, num_points, 3)
    pts = jnp.transpose(pts, (1, 0, 2)).reshape(num_points * B, 3)
    remove_points = 51 * B
    return pts[remove_points:, :]


def reference_forward(point, W_all, b_all, ops_all, index, num_points, B):
    """Pure-JAX replica of the PyTorch forward (given a precomputed index)."""
    pt = point                                                         # (B, 2, 1)
    outs = []
    for i in range(num_points):
        Wi = W_all[index[:, i]]
        bi = b_all[index[:, i]]
        opi = ops_all[index[:, i]]
        pt = jnp.matmul(Wi, pt) + bi
        x1 = jnp.concatenate([pt, opi.reshape(B, 1, 1)], axis=1)       # (B, 3, 1)
        outs.append(x1)
    cat = jnp.concatenate(outs, axis=0)[:, :, 0]                       # (num_points*B, 3)
    return cat[51 * B:, :]


if __name__ == "__main__":
    key = jax.random.PRNGKey(0)
    k1, k2, k3, k4, k5, k6 = jax.random.split(key, 6)

    B = 4                 # model_batches
    num_points = 60       # must be > 51 so the output is non-empty
    F = 6                 # size of the optimized-function dictionary

    # Deterministic synthetic "optimized" parameters (contractive maps).
    W_all = 0.4 * jax.random.normal(k1, (F, 2, 2), jnp.float32)
    b_all = 0.1 * jax.random.normal(k2, (F, 2, 1), jnp.float32)
    ops_all = jax.random.normal(k3, (F,), jnp.float32)
    code = jax.random.normal(k4, (B, F), jnp.float32)
    point = jax.random.normal(k5, (B, 2, 1), jnp.float32)
    sample_key = k6

    fwd = jax.jit(functools.partial(parallel_ifs_forward,
                                    num_points=num_points, model_batches=B))
    out = fwd(point, W_all, b_all, ops_all, code, sample_key=sample_key)
    out = jax.block_until_ready(out)

    # Validate against the pure-JAX serial reference with the same sampled indices.
    index = sample_functions(sample_key, code, num_points, B)
    ref = reference_forward(point, W_all, b_all, ops_all, index, num_points, B)

    assert out.shape == ((num_points - 51) * B, 3), out.shape
    np.testing.assert_allclose(np.asarray(out), np.asarray(ref), rtol=1e-4, atol=1e-4)
    print("KERNEL_OK")
</pallas_src>

<mosaic_0001>
module attributes {stable_mosaic.version = 11 : i64} {
  func.func @_ifs_scan_kernel(%arg0: i32, %arg1: memref<6x8xf32, #tpu.memory_space<smem>>, %arg2: memref<8x128xi32, #tpu.memory_space<vmem>>, %arg3: memref<8x2xf32, #tpu.memory_space<vmem>>, %arg4: memref<8x128xf32, #tpu.memory_space<vmem>>, %arg5: memref<8x128xf32, #tpu.memory_space<vmem>>, %arg6: memref<8x128xf32, #tpu.memory_space<vmem>>) attributes {dimension_semantics = [#tpu.dimension_semantics<parallel>], iteration_bounds = array<i64: 1>, scalar_prefetch = 0 : i64, scratch_operands = 0 : i64, tpu.core_type = #tpu.core_type<tc>, window_params = [{transform_indices = @transform_0, window_bounds = array<i64: 6, 8>}, {transform_indices = @transform_1, window_bounds = array<i64: 8, 128>}, {transform_indices = @transform_2, window_bounds = array<i64: 8, 2>}, {transform_indices = @transform_3, window_bounds = array<i64: 8, 128>}, {transform_indices = @transform_4, window_bounds = array<i64: 8, 128>}, {transform_indices = @transform_5, window_bounds = array<i64: 8, 128>}]} {
    %c0 = arith.constant 0 : index
    %c0_0 = arith.constant 0 : index
    %0 = vector.load %arg2[%c0, %c0_0] : memref<8x128xi32, #tpu.memory_space<vmem>>, vector<8x128xi32>
    %cst = arith.constant 0.000000e+00 : f32
    %1 = vector.broadcast %cst : f32 to vector<8x128xf32>
    %c0_i32 = arith.constant 0 : i32
    %2 = vector.broadcast %c0_i32 : i32 to vector<8x128xi32>
    %3 = arith.cmpi eq, %0, %2 : vector<8x128xi32>
    %4 = arith.extui %3 : vector<8x128xi1> to vector<8x128xi32>
    %5 = arith.sitofp %4 : vector<8x128xi32> to vector<8x128xf32>
    %c0_1 = arith.constant 0 : index
    %c0_2 = arith.constant 0 : index
    %6 = memref.load %arg1[%c0_1, %c0_2] : memref<6x8xf32, #tpu.memory_space<smem>>
    %7 = vector.broadcast %6 : f32 to vector<8x128xf32>
    %8 = arith.mulf %5, %7 : vector<8x128xf32>
    %9 = arith.addf %1, %8 : vector<8x128xf32>
    %c0_3 = arith.constant 0 : index
    %c1 = arith.constant 1 : index
    %10 = memref.load %arg1[%c0_3, %c1] : memref<6x8xf32, #tpu.memory_space<smem>>
    %11 = vector.broadcast %10 : f32 to vector<8x128xf32>
    %12 = arith.mulf %5, %11 : vector<8x128xf32>
    %13 = arith.addf %1, %12 : vector<8x128xf32>
    %c0_4 = arith.constant 0 : index
    %c2 = arith.constant 2 : index
    %14 = memref.load %arg1[%c0_4, %c2] : memref<6x8xf32, #tpu.memory_space<smem>>
    %15 = vector.broadcast %14 : f32 to vector<8x128xf32>
    %16 = arith.mulf %5, %15 : vector<8x128xf32>
    %17 = arith.addf %1, %16 : vector<8x128xf32>
    %c0_5 = arith.constant 0 : index
    %c3 = arith.constant 3 : index
    %18 = memref.load %arg1[%c0_5, %c3] : memref<6x8xf32, #tpu.memory_space<smem>>
    %19 = vector.broadcast %18 : f32 to vector<8x128xf32>
    %20 = arith.mulf %5, %19 : vector<8x128xf32>
    %21 = arith.addf %1, %20 : vector<8x128xf32>
    %c0_6 = arith.constant 0 : index
    %c4 = arith.constant 4 : index
    %22 = memref.load %arg1[%c0_6, %c4] : memref<6x8xf32, #tpu.memory_space<smem>>
    %23 = vector.broadcast %22 : f32 to vector<8x128xf32>
    %24 = arith.mulf %5, %23 : vector<8x128xf32>
    %25 = arith.addf %1, %24 : vector<8x128xf32>
    %c0_7 = arith.constant 0 : index
    %c5 = arith.constant 5 : index
    %26 = memref.load %arg1[%c0_7, %c5] : memref<6x8xf32, #tpu.memory_space<smem>>
    %27 = vector.broadcast %26 : f32 to vector<8x128xf32>
    %28 = arith.mulf %5, %27 : vector<8x128xf32>
    %29 = arith.addf %1, %28 : vector<8x128xf32>
    %c0_8 = arith.constant 0 : index
    %c6 = arith.constant 6 : index
    %30 = memref.load %arg1[%c0_8, %c6] : memref<6x8xf32, #tpu.memory_space<smem>>
    %31 = vector.broadcast %30 : f32 to vector<8x128xf32>
    %32 = arith.mulf %5, %31 : vector<8x128xf32>
    %33 = arith.addf %1, %32 : vector<8x128xf32>
    %c1_i32 = arith.constant 1 : i32
    %34 = vector.broadcast %c1_i32 : i32 to vector<8x128xi32>
    %35 = arith.cmpi eq, %0, %34 : vector<8x128xi32>
    %36 = arith.extui %35 : vector<8x128xi1> to vector<8x128xi32>
    %37 = arith.sitofp %36 : vector<8x128xi32> to vector<8x128xf32>
    %c1_9 = arith.constant 1 : index
    %c0_10 = arith.constant 0 : index
    %38 = memref.load %arg1[%c1_9, %c0_10] : memref<6x8xf32, #tpu.memory_space<smem>>
    %39 = vector.broadcast %38 : f32 to vector<8x128xf32>
    %40 = arith.mulf %37, %39 : vector<8x128xf32>
    %41 = arith.addf %9, %40 : vector<8x128xf32>
    %c1_11 = arith.constant 1 : index
    %c1_12 = arith.constant 1 : index
    %42 = memref.load %arg1[%c1_11, %c1_12] : memref<6x8xf32, #tpu.memory_space<smem>>
    %43 = vector.broadcast %42 : f32 to vector<8x128xf32>
    %44 = arith.mulf %37, %43 : vector<8x128xf32>
    %45 = arith.addf %13, %44 : vector<8x128xf32>
    %c1_13 = arith.constant 1 : index
    %c2_14 = arith.constant 2 : index
    %46 = memref.load %arg1[%c1_13, %c2_14] : memref<6x8xf32, #tpu.memory_space<smem>>
    %47 = vector.broadcast %46 : f32 to vector<8x128xf32>
    %48 = arith.mulf %37, %47 : vector<8x128xf32>
    %49 = arith.addf %17, %48 : vector<8x128xf32>
    %c1_15 = arith.constant 1 : index
    %c3_16 = arith.constant 3 : index
    %50 = memref.load %arg1[%c1_15, %c3_16] : memref<6x8xf32, #tpu.memory_space<smem>>
    %51 = vector.broadcast %50 : f32 to vector<8x128xf32>
    %52 = arith.mulf %37, %51 : vector<8x128xf32>
    %53 = arith.addf %21, %52 : vector<8x128xf32>
    %c1_17 = arith.constant 1 : index
    %c4_18 = arith.constant 4 : index
    %54 = memref.load %arg1[%c1_17, %c4_18] : memref<6x8xf32, #tpu.memory_space<smem>>
    %55 = vector.broadcast %54 : f32 to vector<8x128xf32>
    %56 = arith.mulf %37, %55 : vector<8x128xf32>
    %57 = arith.addf %25, %56 : vector<8x128xf32>
    %c1_19 = arith.constant 1 : index
    %c5_20 = arith.constant 5 : index
    %58 = memref.load %arg1[%c1_19, %c5_20] : memref<6x8xf32, #tpu.memory_space<smem>>
    %59 = vector.broadcast %58 : f32 to vector<8x128xf32>
    %60 = arith.mulf %37, %59 : vector<8x128xf32>
    %61 = arith.addf %29, %60 : vector<8x128xf32>
    %c1_21 = arith.constant 1 : index
    %c6_22 = arith.constant 6 : index
    %62 = memref.load %arg1[%c1_21, %c6_22] : memref<6x8xf32, #tpu.memory_space<smem>>
    %63 = vector.broadcast %62 : f32 to vector<8x128xf32>
    %64 = arith.mulf %37, %63 : vector<8x128xf32>
    %65 = arith.addf %33, %64 : vector<8x128xf32>
    %c2_i32 = arith.constant 2 : i32
    %66 = vector.broadcast %c2_i32 : i32 to vector<8x128xi32>
    %67 = arith.cmpi eq, %0, %66 : vector<8x128xi32>
    %68 = arith.extui %67 : vector<8x128xi1> to vector<8x128xi32>
    %69 = arith.sitofp %68 : vector<8x128xi32> to vector<8x128xf32>
    %c2_23 = arith.constant 2 : index
    %c0_24 = arith.constant 0 : index
    %70 = memref.load %arg1[%c2_23, %c0_24] : memref<6x8xf32, #tpu.memory_space<smem>>
    %71 = vector.broadcast %70 : f32 to vector<8x128xf32>
    %72 = arith.mulf %69, %71 : vector<8x128xf32>
    %73 = arith.addf %41, %72 : vector<8x128xf32>
    %c2_25 = arith.constant 2 : index
    %c1_26 = arith.constant 1 : index
    %74 = memref.load %arg1[%c2_25, %c1_26] : memref<6x8xf32, #tpu.memory_space<smem>>
    %75 = vector.broadcast %74 : f32 to vector<8x128xf32>
    %76 = arith.mulf %69, %75 : vector<8x128xf32>
    %77 = arith.addf %45, %76 : vector<8x128xf32>
    %c2_27 = arith.constant 2 : index
    %c2_28 = arith.constant 2 : index
    %78 = memref.load %arg1[%c2_27, %c2_28] : memref<6x8xf32, #tpu.memory_space<smem>>
    %79 = vector.broadcast %78 : f32 to vector<8x128xf32>
    %80 = arith.mulf %69, %79 : vector<8x128xf32>
    %81 = arith.addf %49, %80 : vector<8x128xf32>
    %c2_29 = arith.constant 2 : index
    %c3_30 = arith.constant 3 : index
    %82 = memref.load %arg1[%c2_29, %c3_30] : memref<6x8xf32, #tpu.memory_space<smem>>
    %83 = vector.broadcast %82 : f32 to vector<8x128xf32>
    %84 = arith.mulf %69, %83 : vector<8x128xf32>
    %85 = arith.addf %53, %84 : vector<8x128xf32>
    %c2_31 = arith.constant 2 : index
    %c4_32 = arith.constant 4 : index
    %86 = memref.load %arg1[%c2_31, %c4_32] : memref<6x8xf32, #tpu.memory_space<smem>>
    %87 = vector.broadcast %86 : f32 to vector<8x128xf32>
    %88 = arith.mulf %69, %87 : vector<8x128xf32>
    %89 = arith.addf %57, %88 : vector<8x128xf32>
    %c2_33 = arith.constant 2 : index
    %c5_34 = arith.constant 5 : index
    %90 = memref.load %arg1[%c2_33, %c5_34] : memref<6x8xf32, #tpu.memory_space<smem>>
    %91 = vector.broadcast %90 : f32 to vector<8x128xf32>
    %92 = arith.mulf %69, %91 : vector<8x128xf32>
    %93 = arith.addf %61, %92 : vector<8x128xf32>
    %c2_35 = arith.constant 2 : index
    %c6_36 = arith.constant 6 : index
    %94 = memref.load %arg1[%c2_35, %c6_36] : memref<6x8xf32, #tpu.memory_space<smem>>
    %95 = vector.broadcast %94 : f32 to vector<8x128xf32>
    %96 = arith.mulf %69, %95 : vector<8x128xf32>
    %97 = arith.addf %65, %96 : vector<8x128xf32>
    %c3_i32 = arith.constant 3 : i32
    %98 = vector.broadcast %c3_i32 : i32 to vector<8x128xi32>
    %99 = arith.cmpi eq, %0, %98 : vector<8x128xi32>
    %100 = arith.extui %99 : vector<8x128xi1> to vector<8x128xi32>
    %101 = arith.sitofp %100 : vector<8x128xi32> to vector<8x128xf32>
    %c3_37 = arith.constant 3 : index
    %c0_38 = arith.constant 0 : index
    %102 = memref.load %arg1[%c3_37, %c0_38] : memref<6x8xf32, #tpu.memory_space<smem>>
    %103 = vector.broadcast %102 : f32 to vector<8x128xf32>
    %104 = arith.mulf %101, %103 : vector<8x128xf32>
    %105 = arith.addf %73, %104 : vector<8x128xf32>
    %c3_39 = arith.constant 3 : index
    %c1_40 = arith.constant 1 : index
    %106 = memref.load %arg1[%c3_39, %c1_40] : memref<6x8xf32, #tpu.memory_space<smem>>
    %107 = vector.broadcast %106 : f32 to vector<8x128xf32>
    %108 = arith.mulf %101, %107 : vector<8x128xf32>
    %109 = arith.addf %77, %108 : vector<8x128xf32>
    %c3_41 = arith.constant 3 : index
    %c2_42 = arith.constant 2 : index
    %110 = memref.load %arg1[%c3_41, %c2_42] : memref<6x8xf32, #tpu.memory_space<smem>>
    %111 = vector.broadcast %110 : f32 to vector<8x128xf32>
    %112 = arith.mulf %101, %111 : vector<8x128xf32>
    %113 = arith.addf %81, %112 : vector<8x128xf32>
    %c3_43 = arith.constant 3 : index
    %c3_44 = arith.constant 3 : index
    %114 = memref.load %arg1[%c3_43, %c3_44] : memref<6x8xf32, #tpu.memory_space<smem>>
    %115 = vector.broadcast %114 : f32 to vector<8x128xf32>
    %116 = arith.mulf %101, %115 : vector<8x128xf32>
    %117 = arith.addf %85, %116 : vector<8x128xf32>
    %c3_45 = arith.constant 3 : index
    %c4_46 = arith.constant 4 : index
    %118 = memref.load %arg1[%c3_45, %c4_46] : memref<6x8xf32, #tpu.memory_space<smem>>
    %119 = vector.broadcast %118 : f32 to vector<8x128xf32>
    %120 = arith.mulf %101, %119 : vector<8x128xf32>
    %121 = arith.addf %89, %120 : vector<8x128xf32>
    %c3_47 = arith.constant 3 : index
    %c5_48 = arith.constant 5 : index
    %122 = memref.load %arg1[%c3_47, %c5_48] : memref<6x8xf32, #tpu.memory_space<smem>>
    %123 = vector.broadcast %122 : f32 to vector<8x128xf32>
    %124 = arith.mulf %101, %123 : vector<8x128xf32>
    %125 = arith.addf %93, %124 : vector<8x128xf32>
    %c3_49 = arith.constant 3 : index
    %c6_50 = arith.constant 6 : index
    %126 = memref.load %arg1[%c3_49, %c6_50] : memref<6x8xf32, #tpu.memory_space<smem>>
    %127 = vector.broadcast %126 : f32 to vector<8x128xf32>
    %128 = arith.mulf %101, %127 : vector<8x128xf32>
    %129 = arith.addf %97, %128 : vector<8x128xf32>
    %c4_i32 = arith.constant 4 : i32
    %130 = vector.broadcast %c4_i32 : i32 to vector<8x128xi32>
    %131 = arith.cmpi eq, %0, %130 : vector<8x128xi32>
    %132 = arith.extui %131 : vector<8x128xi1> to vector<8x128xi32>
    %133 = arith.sitofp %132 : vector<8x128xi32> to vector<8x128xf32>
    %c4_51 = arith.constant 4 : index
    %c0_52 = arith.constant 0 : index
    %134 = memref.load %arg1[%c4_51, %c0_52] : memref<6x8xf32, #tpu.memory_space<smem>>
    %135 = vector.broadcast %134 : f32 to vector<8x128xf32>
    %136 = arith.mulf %133, %135 : vector<8x128xf32>
    %137 = arith.addf %105, %136 : vector<8x128xf32>
    %c4_53 = arith.constant 4 : index
    %c1_54 = arith.constant 1 : index
    %138 = memref.load %arg1[%c4_53, %c1_54] : memref<6x8xf32, #tpu.memory_space<smem>>
    %139 = vector.broadcast %138 : f32 to vector<8x128xf32>
    %140 = arith.mulf %133, %139 : vector<8x128xf32>
    %141 = arith.addf %109, %140 : vector<8x128xf32>
    %c4_55 = arith.constant 4 : index
    %c2_56 = arith.constant 2 : index
    %142 = memref.load %arg1[%c4_55, %c2_56] : memref<6x8xf32, #tpu.memory_space<smem>>
    %143 = vector.broadcast %142 : f32 to vector<8x128xf32>
    %144 = arith.mulf %133, %143 : vector<8x128xf32>
    %145 = arith.addf %113, %144 : vector<8x128xf32>
    %c4_57 = arith.constant 4 : index
    %c3_58 = arith.constant 3 : index
    %146 = memref.load %arg1[%c4_57, %c3_58] : memref<6x8xf32, #tpu.memory_space<smem>>
    %147 = vector.broadcast %146 : f32 to vector<8x128xf32>
    %148 = arith.mulf %133, %147 : vector<8x128xf32>
    %149 = arith.addf %117, %148 : vector<8x128xf32>
    %c4_59 = arith.constant 4 : index
    %c4_60 = arith.constant 4 : index
    %150 = memref.load %arg1[%c4_59, %c4_60] : memref<6x8xf32, #tpu.memory_space<smem>>
    %151 = vector.broadcast %150 : f32 to vector<8x128xf32>
    %152 = arith.mulf %133, %151 : vector<8x128xf32>
    %153 = arith.addf %121, %152 : vector<8x128xf32>
    %c4_61 = arith.constant 4 : index
    %c5_62 = arith.constant 5 : index
    %154 = memref.load %arg1[%c4_61, %c5_62] : memref<6x8xf32, #tpu.memory_space<smem>>
    %155 = vector.broadcast %154 : f32 to vector<8x128xf32>
    %156 = arith.mulf %133, %155 : vector<8x128xf32>
    %157 = arith.addf %125, %156 : vector<8x128xf32>
    %c4_63 = arith.constant 4 : index
    %c6_64 = arith.constant 6 : index
    %158 = memref.load %arg1[%c4_63, %c6_64] : memref<6x8xf32, #tpu.memory_space<smem>>
    %159 = vector.broadcast %158 : f32 to vector<8x128xf32>
    %160 = arith.mulf %133, %159 : vector<8x128xf32>
    %161 = arith.addf %129, %160 : vector<8x128xf32>
    %c5_i32 = arith.constant 5 : i32
    %162 = vector.broadcast %c5_i32 : i32 to vector<8x128xi32>
    %163 = arith.cmpi eq, %0, %162 : vector<8x128xi32>
    %164 = arith.extui %163 : vector<8x128xi1> to vector<8x128xi32>
    %165 = arith.sitofp %164 : vector<8x128xi32> to vector<8x128xf32>
    %c5_65 = arith.constant 5 : index
    %c0_66 = arith.constant 0 : index
    %166 = memref.load %arg1[%c5_65, %c0_66] : memref<6x8xf32, #tpu.memory_space<smem>>
    %167 = vector.broadcast %166 : f32 to vector<8x128xf32>
    %168 = arith.mulf %165, %167 : vector<8x128xf32>
    %169 = arith.addf %137, %168 : vector<8x128xf32>
    %c5_67 = arith.constant 5 : index
    %c1_68 = arith.constant 1 : index
    %170 = memref.load %arg1[%c5_67, %c1_68] : memref<6x8xf32, #tpu.memory_space<smem>>
    %171 = vector.broadcast %170 : f32 to vector<8x128xf32>
    %172 = arith.mulf %165, %171 : vector<8x128xf32>
    %173 = arith.addf %141, %172 : vector<8x128xf32>
    %c5_69 = arith.constant 5 : index
    %c2_70 = arith.constant 2 : index
    %174 = memref.load %arg1[%c5_69, %c2_70] : memref<6x8xf32, #tpu.memory_space<smem>>
    %175 = vector.broadcast %174 : f32 to vector<8x128xf32>
    %176 = arith.mulf %165, %175 : vector<8x128xf32>
    %177 = arith.addf %145, %176 : vector<8x128xf32>
    %c5_71 = arith.constant 5 : index
    %c3_72 = arith.constant 3 : index
    %178 = memref.load %arg1[%c5_71, %c3_72] : memref<6x8xf32, #tpu.memory_space<smem>>
    %179 = vector.broadcast %178 : f32 to vector<8x128xf32>
    %180 = arith.mulf %165, %179 : vector<8x128xf32>
    %181 = arith.addf %149, %180 : vector<8x128xf32>
    %c5_73 = arith.constant 5 : index
    %c4_74 = arith.constant 4 : index
    %182 = memref.load %arg1[%c5_73, %c4_74] : memref<6x8xf32, #tpu.memory_space<smem>>
    %183 = vector.broadcast %182 : f32 to vector<8x128xf32>
    %184 = arith.mulf %165, %183 : vector<8x128xf32>
    %185 = arith.addf %153, %184 : vector<8x128xf32>
    %c5_75 = arith.constant 5 : index
    %c5_76 = arith.constant 5 : index
    %186 = memref.load %arg1[%c5_75, %c5_76] : memref<6x8xf32, #tpu.memory_space<smem>>
    %187 = vector.broadcast %186 : f32 to vector<8x128xf32>
    %188 = arith.mulf %165, %187 : vector<8x128xf32>
    %189 = arith.addf %157, %188 : vector<8x128xf32>
    %c5_77 = arith.constant 5 : index
    %c6_78 = arith.constant 6 : index
    %190 = memref.load %arg1[%c5_77, %c6_78] : memref<6x8xf32, #tpu.memory_space<smem>>
    %191 = vector.broadcast %190 : f32 to vector<8x128xf32>
    %192 = arith.mulf %165, %191 : vector<8x128xf32>
    %193 = arith.addf %161, %192 : vector<8x128xf32>
    %194 = tpu.iota {dimensions = array<i32: 1>} : vector<8x128xi32>
    %c1_i32_79 = arith.constant 1 : i32
    %195 = vector.broadcast %c1_i32_79 : i32 to vector<8x128xi32>
    %196 = arith.cmpi sge, %194, %195 : vector<8x128xi32>
    %c1_i32_80 = arith.constant 1 : i32
    %197 = tpu.dynamic_rotate %169 by %c1_i32_80 dim 1 : vector<8x128xf32>, i32 -> vector<8x128xf32>
    %cst_81 = arith.constant 1.000000e+00 : f32
    %198 = vector.broadcast %cst_81 : f32 to vector<8x128xf32>
    %199 = arith.select %196, %197, %198 : vector<8x128xi1>, vector<8x128xf32>
    %c1_i32_82 = arith.constant 1 : i32
    %200 = tpu.dynamic_rotate %173 by %c1_i32_82 dim 1 : vector<8x128xf32>, i32 -> vector<8x128xf32>
    %cst_83 = arith.constant 0.000000e+00 : f32
    %201 = vector.broadcast %cst_83 : f32 to vector<8x128xf32>
    %202 = arith.select %196, %200, %201 : vector<8x128xi1>, vector<8x128xf32>
    %c1_i32_84 = arith.constant 1 : i32
    %203 = tpu.dynamic_rotate %177 by %c1_i32_84 dim 1 : vector<8x128xf32>, i32 -> vector<8x128xf32>
    %cst_85 = arith.constant 0.000000e+00 : f32
    %204 = vector.broadcast %cst_85 : f32 to vector<8x128xf32>
    %205 = arith.select %196, %203, %204 : vector<8x128xi1>, vector<8x128xf32>
    %c1_i32_86 = arith.constant 1 : i32
    %206 = tpu.dynamic_rotate %181 by %c1_i32_86 dim 1 : vector<8x128xf32>, i32 -> vector<8x128xf32>
    %cst_87 = arith.constant 1.000000e+00 : f32
    %207 = vector.broadcast %cst_87 : f32 to vector<8x128xf32>
    %208 = arith.select %196, %206, %207 : vector<8x128xi1>, vector<8x128xf32>
    %c1_i32_88 = arith.constant 1 : i32
    %209 = tpu.dynamic_rotate %185 by %c1_i32_88 dim 1 : vector<8x128xf32>, i32 -> vector<8x128xf32>
    %cst_89 = arith.constant 0.000000e+00 : f32
    %210 = vector.broadcast %cst_89 : f32 to vector<8x128xf32>
    %211 = arith.select %196, %209, %210 : vector<8x128xi1>, vector<8x128xf32>
    %c1_i32_90 = arith.constant 1 : i32
    %212 = tpu.dynamic_rotate %189 by %c1_i32_90 dim 1 : vector<8x128xf32>, i32 -> vector<8x128xf32>
    %cst_91 = arith.constant 0.000000e+00 : f32
    %213 = vector.broadcast %cst_91 : f32 to vector<8x128xf32>
    %214 = arith.select %196, %212, %213 : vector<8x128xi1>, vector<8x128xf32>
    %215 = arith.mulf %169, %199 : vector<8x128xf32>
    %216 = arith.mulf %173, %205 : vector<8x128xf32>
    %217 = arith.addf %215, %216 : vector<8x128xf32>
    %218 = arith.mulf %169, %202 : vector<8x128xf32>
    %219 = arith.mulf %173, %208 : vector<8x128xf32>
    %220 = arith.addf %218, %219 : vector<8x128xf32>
    %221 = arith.mulf %177, %199 : vector<8x128xf32>
    %222 = arith.mulf %181, %205 : vector<8x128xf32>
    %223 = arith.addf %221, %222 : vector<8x128xf32>
    %224 = arith.mulf %177, %202 : vector<8x128xf32>
    %225 = arith.mulf %181, %208 : vector<8x128xf32>
    %226 = arith.addf %224, %225 : vector<8x128xf32>
    %227 = arith.mulf %169, %211 : vector<8x128xf32>
    %228 = arith.mulf %173, %214 : vector<8x128xf32>
    %229 = arith.addf %227, %228 : vector<8x128xf32>
    %230 = arith.addf %229, %185 : vector<8x128xf32>
    %231 = arith.mulf %177, %211 : vector<8x128xf32>
    %232 = arith.mulf %181, %214 : vector<8x128xf32>
    %233 = arith.addf %231, %232 : vector<8x128xf32>
    %234 = arith.addf %233, %189 : vector<8x128xf32>
    %c2_i32_92 = arith.constant 2 : i32
    %235 = vector.broadcast %c2_i32_92 : i32 to vector<8x128xi32>
    %236 = arith.cmpi sge, %194, %235 : vector<8x128xi32>
    %c2_i32_93 = arith.constant 2 : i32
    %237 = tpu.dynamic_rotate %217 by %c2_i32_93 dim 1 : vector<8x128xf32>, i32 -> vector<8x128xf32>
    %cst_94 = arith.constant 1.000000e+00 : f32
    %238 = vector.broadcast %cst_94 : f32 to vector<8x128xf32>
    %239 = arith.select %236, %237, %238 : vector<8x128xi1>, vector<8x128xf32>
    %c2_i32_95 = arith.constant 2 : i32
    %240 = tpu.dynamic_rotate %220 by %c2_i32_95 dim 1 : vector<8x128xf32>, i32 -> vector<8x128xf32>
    %cst_96 = arith.constant 0.000000e+00 : f32
    %241 = vector.broadcast %cst_96 : f32 to vector<8x128xf32>
    %242 = arith.select %236, %240, %241 : vector<8x128xi1>, vector<8x128xf32>
    %c2_i32_97 = arith.constant 2 : i32
    %243 = tpu.dynamic_rotate %223 by %c2_i32_97 dim 1 : vector<8x128xf32>, i32 -> vector<8x128xf32>
    %cst_98 = arith.constant 0.000000e+00 : f32
    %244 = vector.broadcast %cst_98 : f32 to vector<8x128xf32>
    %245 = arith.select %236, %243, %244 : vector<8x128xi1>, vector<8x128xf32>
    %c2_i32_99 = arith.constant 2 : i32
    %246 = tpu.dynamic_rotate %226 by %c2_i32_99 dim 1 : vector<8x128xf32>, i32 -> vector<8x128xf32>
    %cst_100 = arith.constant 1.000000e+00 : f32
    %247 = vector.broadcast %cst_100 : f32 to vector<8x128xf32>
    %248 = arith.select %236, %246, %247 : vector<8x128xi1>, vector<8x128xf32>
    %c2_i32_101 = arith.constant 2 : i32
    %249 = tpu.dynamic_rotate %230 by %c2_i32_101 dim 1 : vector<8x128xf32>, i32 -> vector<8x128xf32>
    %cst_102 = arith.constant 0.000000e+00 : f32
    %250 = vector.broadcast %cst_102 : f32 to vector<8x128xf32>
    %251 = arith.select %236, %249, %250 : vector<8x128xi1>, vector<8x128xf32>
    %c2_i32_103 = arith.constant 2 : i32
    %252 = tpu.dynamic_rotate %234 by %c2_i32_103 dim 1 : vector<8x128xf32>, i32 -> vector<8x128xf32>
    %cst_104 = arith.constant 0.000000e+00 : f32
    %253 = vector.broadcast %cst_104 : f32 to vector<8x128xf32>
    %254 = arith.select %236, %252, %253 : vector<8x128xi1>, vector<8x128xf32>
    %255 = arith.mulf %217, %239 : vector<8x128xf32>
    %256 = arith.mulf %220, %245 : vector<8x128xf32>
    %257 = arith.addf %255, %256 : vector<8x128xf32>
    %258 = arith.mulf %217, %242 : vector<8x128xf32>
    %259 = arith.mulf %220, %248 : vector<8x128xf32>
    %260 = arith.addf %258, %259 : vector<8x128xf32>
    %261 = arith.mulf %223, %239 : vector<8x128xf32>
    %262 = arith.mulf %226, %245 : vector<8x128xf32>
    %263 = arith.addf %261, %262 : vector<8x128xf32>
    %264 = arith.mulf %223, %242 : vector<8x128xf32>
    %265 = arith.mulf %226, %248 : vector<8x128xf32>
    %266 = arith.addf %264, %265 : vector<8x128xf32>
    %267 = arith.mulf %217, %251 : vector<8x128xf32>
    %268 = arith.mulf %220, %254 : vector<8x128xf32>
    %269 = arith.addf %267, %268 : vector<8x128xf32>
    %270 = arith.addf %269, %230 : vector<8x128xf32>
    %271 = arith.mulf %223, %251 : vector<8x128xf32>
    %272 = arith.mulf %226, %254 : vector<8x128xf32>
    %273 = arith.addf %271, %272 : vector<8x128xf32>
    %274 = arith.addf %273, %234 : vector<8x128xf32>
    %c4_i32_105 = arith.constant 4 : i32
    %275 = vector.broadcast %c4_i32_105 : i32 to vector<8x128xi32>
    %276 = arith.cmpi sge, %194, %275 : vector<8x128xi32>
    %c4_i32_106 = arith.constant 4 : i32
    %277 = tpu.dynamic_rotate %257 by %c4_i32_106 dim 1 : vector<8x128xf32>, i32 -> vector<8x128xf32>
    %cst_107 = arith.constant 1.000000e+00 : f32
    %278 = vector.broadcast %cst_107 : f32 to vector<8x128xf32>
    %279 = arith.select %276, %277, %278 : vector<8x128xi1>, vector<8x128xf32>
    %c4_i32_108 = arith.constant 4 : i32
    %280 = tpu.dynamic_rotate %260 by %c4_i32_108 dim 1 : vector<8x128xf32>, i32 -> vector<8x128xf32>
    %cst_109 = arith.constant 0.000000e+00 : f32
    %281 = vector.broadcast %cst_109 : f32 to vector<8x128xf32>
    %282 = arith.select %276, %280, %281 : vector<8x128xi1>, vector<8x128xf32>
    %c4_i32_110 = arith.constant 4 : i32
    %283 = tpu.dynamic_rotate %263 by %c4_i32_110 dim 1 : vector<8x128xf32>, i32 -> vector<8x128xf32>
    %cst_111 = arith.constant 0.000000e+00 : f32
    %284 = vector.broadcast %cst_111 : f32 to vector<8x128xf32>
    %285 = arith.select %276, %283, %284 : vector<8x128xi1>, vector<8x128xf32>
    %c4_i32_112 = arith.constant 4 : i32
    %286 = tpu.dynamic_rotate %266 by %c4_i32_112 dim 1 : vector<8x128xf32>, i32 -> vector<8x128xf32>
    %cst_113 = arith.constant 1.000000e+00 : f32
    %287 = vector.broadcast %cst_113 : f32 to vector<8x128xf32>
    %288 = arith.select %276, %286, %287 : vector<8x128xi1>, vector<8x128xf32>
    %c4_i32_114 = arith.constant 4 : i32
    %289 = tpu.dynamic_rotate %270 by %c4_i32_114 dim 1 : vector<8x128xf32>, i32 -> vector<8x128xf32>
    %cst_115 = arith.constant 0.000000e+00 : f32
    %290 = vector.broadcast %cst_115 : f32 to vector<8x128xf32>
    %291 = arith.select %276, %289, %290 : vector<8x128xi1>, vector<8x128xf32>
    %c4_i32_116 = arith.constant 4 : i32
    %292 = tpu.dynamic_rotate %274 by %c4_i32_116 dim 1 : vector<8x128xf32>, i32 -> vector<8x128xf32>
    %cst_117 = arith.constant 0.000000e+00 : f32
    %293 = vector.broadcast %cst_117 : f32 to vector<8x128xf32>
    %294 = arith.select %276, %292, %293 : vector<8x128xi1>, vector<8x128xf32>
    %295 = arith.mulf %257, %279 : vector<8x128xf32>
    %296 = arith.mulf %260, %285 : vector<8x128xf32>
    %297 = arith.addf %295, %296 : vector<8x128xf32>
    %298 = arith.mulf %257, %282 : vector<8x128xf32>
    %299 = arith.mulf %260, %288 : vector<8x128xf32>
    %300 = arith.addf %298, %299 : vector<8x128xf32>
    %301 = arith.mulf %263, %279 : vector<8x128xf32>
    %302 = arith.mulf %266, %285 : vector<8x128xf32>
    %303 = arith.addf %301, %302 : vector<8x128xf32>
    %304 = arith.mulf %263, %282 : vector<8x128xf32>
    %305 = arith.mulf %266, %288 : vector<8x128xf32>
    %306 = arith.addf %304, %305 : vector<8x128xf32>
    %307 = arith.mulf %257, %291 : vector<8x128xf32>
    %308 = arith.mulf %260, %294 : vector<8x128xf32>
    %309 = arith.addf %307, %308 : vector<8x128xf32>
    %310 = arith.addf %309, %270 : vector<8x128xf32>
    %311 = arith.mulf %263, %291 : vector<8x128xf32>
    %312 = arith.mulf %266, %294 : vector<8x128xf32>
    %313 = arith.addf %311, %312 : vector<8x128xf32>
    %314 = arith.addf %313, %274 : vector<8x128xf32>
    %c8_i32 = arith.constant 8 : i32
    %315 = vector.broadcast %c8_i32 : i32 to vector<8x128xi32>
    %316 = arith.cmpi sge, %194, %315 : vector<8x128xi32>
    %c8_i32_118 = arith.constant 8 : i32
    %317 = tpu.dynamic_rotate %297 by %c8_i32_118 dim 1 : vector<8x128xf32>, i32 -> vector<8x128xf32>
    %cst_119 = arith.constant 1.000000e+00 : f32
    %318 = vector.broadcast %cst_119 : f32 to vector<8x128xf32>
    %319 = arith.select %316, %317, %318 : vector<8x128xi1>, vector<8x128xf32>
    %c8_i32_120 = arith.constant 8 : i32
    %320 = tpu.dynamic_rotate %300 by %c8_i32_120 dim 1 : vector<8x128xf32>, i32 -> vector<8x128xf32>
    %cst_121 = arith.constant 0.000000e+00 : f32
    %321 = vector.broadcast %cst_121 : f32 to vector<8x128xf32>
    %322 = arith.select %316, %320, %321 : vector<8x128xi1>, vector<8x128xf32>
    %c8_i32_122 = arith.constant 8 : i32
    %323 = tpu.dynamic_rotate %303 by %c8_i32_122 dim 1 : vector<8x128xf32>, i32 -> vector<8x128xf32>
    %cst_123 = arith.constant 0.000000e+00 : f32
    %324 = vector.broadcast %cst_123 : f32 to vector<8x128xf32>
    %325 = arith.select %316, %323, %324 : vector<8x128xi1>, vector<8x128xf32>
    %c8_i32_124 = arith.constant 8 : i32
    %326 = tpu.dynamic_rotate %306 by %c8_i32_124 dim 1 : vector<8x128xf32>, i32 -> vector<8x128xf32>
    %cst_125 = arith.constant 1.000000e+00 : f32
    %327 = vector.broadcast %cst_125 : f32 to vector<8x128xf32>
    %328 = arith.select %316, %326, %327 : vector<8x128xi1>, vector<8x128xf32>
    %c8_i32_126 = arith.constant 8 : i32
    %329 = tpu.dynamic_rotate %310 by %c8_i32_126 dim 1 : vector<8x128xf32>, i32 -> vector<8x128xf32>
    %cst_127 = arith.constant 0.000000e+00 : f32
    %330 = vector.broadcast %cst_127 : f32 to vector<8x128xf32>
    %331 = arith.select %316, %329, %330 : vector<8x128xi1>, vector<8x128xf32>
    %c8_i32_128 = arith.constant 8 : i32
    %332 = tpu.dynamic_rotate %314 by %c8_i32_128 dim 1 : vector<8x128xf32>, i32 -> vector<8x128xf32>
    %cst_129 = arith.constant 0.000000e+00 : f32
    %333 = vector.broadcast %cst_129 : f32 to vector<8x128xf32>
    %334 = arith.select %316, %332, %333 : vector<8x128xi1>, vector<8x128xf32>
    %335 = arith.mulf %297, %319 : vector<8x128xf32>
    %336 = arith.mulf %300, %325 : vector<8x128xf32>
    %337 = arith.addf %335, %336 : vector<8x128xf32>
    %338 = arith.mulf %297, %322 : vector<8x128xf32>
    %339 = arith.mulf %300, %328 : vector<8x128xf32>
    %340 = arith.addf %338, %339 : vector<8x128xf32>
    %341 = arith.mulf %303, %319 : vector<8x128xf32>
    %342 = arith.mulf %306, %325 : vector<8x128xf32>
    %343 = arith.addf %341, %342 : vector<8x128xf32>
    %344 = arith.mulf %303, %322 : vector<8x128xf32>
    %345 = arith.mulf %306, %328 : vector<8x128xf32>
    %346 = arith.addf %344, %345 : vector<8x128xf32>
    %347 = arith.mulf %297, %331 : vector<8x128xf32>
    %348 = arith.mulf %300, %334 : vector<8x128xf32>
    %349 = arith.addf %347, %348 : vector<8x128xf32>
    %350 = arith.addf %349, %310 : vector<8x128xf32>
    %351 = arith.mulf %303, %331 : vector<8x128xf32>
    %352 = arith.mulf %306, %334 : vector<8x128xf32>
    %353 = arith.addf %351, %352 : vector<8x128xf32>
    %354 = arith.addf %353, %314 : vector<8x128xf32>
    %c16_i32 = arith.constant 16 : i32
    %355 = vector.broadcast %c16_i32 : i32 to vector<8x128xi32>
    %356 = arith.cmpi sge, %194, %355 : vector<8x128xi32>
    %c16_i32_130 = arith.constant 16 : i32
    %357 = tpu.dynamic_rotate %337 by %c16_i32_130 dim 1 : vector<8x128xf32>, i32 -> vector<8x128xf32>
    %cst_131 = arith.constant 1.000000e+00 : f32
    %358 = vector.broadcast %cst_131 : f32 to vector<8x128xf32>
    %359 = arith.select %356, %357, %358 : vector<8x128xi1>, vector<8x128xf32>
    %c16_i32_132 = arith.constant 16 : i32
    %360 = tpu.dynamic_rotate %340 by %c16_i32_132 dim 1 : vector<8x128xf32>, i32 -> vector<8x128xf32>
    %cst_133 = arith.constant 0.000000e+00 : f32
    %361 = vector.broadcast %cst_133 : f32 to vector<8x128xf32>
    %362 = arith.select %356, %360, %361 : vector<8x128xi1>, vector<8x128xf32>
    %c16_i32_134 = arith.constant 16 : i32
    %363 = tpu.dynamic_rotate %343 by %c16_i32_134 dim 1 : vector<8x128xf32>, i32 -> vector<8x128xf32>
    %cst_135 = arith.constant 0.000000e+00 : f32
    %364 = vector.broadcast %cst_135 : f32 to vector<8x128xf32>
    %365 = arith.select %356, %363, %364 : vector<8x128xi1>, vector<8x128xf32>
    %c16_i32_136 = arith.constant 16 : i32
    %366 = tpu.dynamic_rotate %346 by %c16_i32_136 dim 1 : vector<8x128xf32>, i32 -> vector<8x128xf32>
    %cst_137 = arith.constant 1.000000e+00 : f32
    %367 = vector.broadcast %cst_137 : f32 to vector<8x128xf32>
    %368 = arith.select %356, %366, %367 : vector<8x128xi1>, vector<8x128xf32>
    %c16_i32_138 = arith.constant 16 : i32
    %369 = tpu.dynamic_rotate %350 by %c16_i32_138 dim 1 : vector<8x128xf32>, i32 -> vector<8x128xf32>
    %cst_139 = arith.constant 0.000000e+00 : f32
    %370 = vector.broadcast %cst_139 : f32 to vector<8x128xf32>
    %371 = arith.select %356, %369, %370 : vector<8x128xi1>, vector<8x128xf32>
    %c16_i32_140 = arith.constant 16 : i32
    %372 = tpu.dynamic_rotate %354 by %c16_i32_140 dim 1 : vector<8x128xf32>, i32 -> vector<8x128xf32>
    %cst_141 = arith.constant 0.000000e+00 : f32
    %373 = vector.broadcast %cst_141 : f32 to vector<8x128xf32>
    %374 = arith.select %356, %372, %373 : vector<8x128xi1>, vector<8x128xf32>
    %375 = arith.mulf %337, %359 : vector<8x128xf32>
    %376 = arith.mulf %340, %365 : vector<8x128xf32>
    %377 = arith.addf %375, %376 : vector<8x128xf32>
    %378 = arith.mulf %337, %362 : vector<8x128xf32>
    %379 = arith.mulf %340, %368 : vector<8x128xf32>
    %380 = arith.addf %378, %379 : vector<8x128xf32>
    %381 = arith.mulf %343, %359 : vector<8x128xf32>
    %382 = arith.mulf %346, %365 : vector<8x128xf32>
    %383 = arith.addf %381, %382 : vector<8x128xf32>
    %384 = arith.mulf %343, %362 : vector<8x128xf32>
    %385 = arith.mulf %346, %368 : vector<8x128xf32>
    %386 = arith.addf %384, %385 : vector<8x128xf32>
    %387 = arith.mulf %337, %371 : vector<8x128xf32>
    %388 = arith.mulf %340, %374 : vector<8x128xf32>
    %389 = arith.addf %387, %388 : vector<8x128xf32>
    %390 = arith.addf %389, %350 : vector<8x128xf32>
    %391 = arith.mulf %343, %371 : vector<8x128xf32>
    %392 = arith.mulf %346, %374 : vector<8x128xf32>
    %393 = arith.addf %391, %392 : vector<8x128xf32>
    %394 = arith.addf %393, %354 : vector<8x128xf32>
    %c32_i32 = arith.constant 32 : i32
    %395 = vector.broadcast %c32_i32 : i32 to vector<8x128xi32>
    %396 = arith.cmpi sge, %194, %395 : vector<8x128xi32>
    %c32_i32_142 = arith.constant 32 : i32
    %397 = tpu.dynamic_rotate %377 by %c32_i32_142 dim 1 : vector<8x128xf32>, i32 -> vector<8x128xf32>
    %cst_143 = arith.constant 1.000000e+00 : f32
    %398 = vector.broadcast %cst_143 : f32 to vector<8x128xf32>
    %399 = arith.select %396, %397, %398 : vector<8x128xi1>, vector<8x128xf32>
    %c32_i32_144 = arith.constant 32 : i32
    %400 = tpu.dynamic_rotate %380 by %c32_i32_144 dim 1 : vector<8x128xf32>, i32 -> vector<8x128xf32>
    %cst_145 = arith.constant 0.000000e+00 : f32
    %401 = vector.broadcast %cst_145 : f32 to vector<8x128xf32>
    %402 = arith.select %396, %400, %401 : vector<8x128xi1>, vector<8x128xf32>
    %c32_i32_146 = arith.constant 32 : i32
    %403 = tpu.dynamic_rotate %383 by %c32_i32_146 dim 1 : vector<8x128xf32>, i32 -> vector<8x128xf32>
    %cst_147 = arith.constant 0.000000e+00 : f32
    %404 = vector.broadcast %cst_147 : f32 to vector<8x128xf32>
    %405 = arith.select %396, %403, %404 : vector<8x128xi1>, vector<8x128xf32>
    %c32_i32_148 = arith.constant 32 : i32
    %406 = tpu.dynamic_rotate %386 by %c32_i32_148 dim 1 : vector<8x128xf32>, i32 -> vector<8x128xf32>
    %cst_149 = arith.constant 1.000000e+00 : f32
    %407 = vector.broadcast %cst_149 : f32 to vector<8x128xf32>
    %408 = arith.select %396, %406, %407 : vector<8x128xi1>, vector<8x128xf32>
    %c32_i32_150 = arith.constant 32 : i32
    %409 = tpu.dynamic_rotate %390 by %c32_i32_150 dim 1 : vector<8x128xf32>, i32 -> vector<8x128xf32>
    %cst_151 = arith.constant 0.000000e+00 : f32
    %410 = vector.broadcast %cst_151 : f32 to vector<8x128xf32>
    %411 = arith.select %396, %409, %410 : vector<8x128xi1>, vector<8x128xf32>
    %c32_i32_152 = arith.constant 32 : i32
    %412 = tpu.dynamic_rotate %394 by %c32_i32_152 dim 1 : vector<8x128xf32>, i32 -> vector<8x128xf32>
    %cst_153 = arith.constant 0.000000e+00 : f32
    %413 = vector.broadcast %cst_153 : f32 to vector<8x128xf32>
    %414 = arith.select %396, %412, %413 : vector<8x128xi1>, vector<8x128xf32>
    %415 = arith.mulf %377, %399 : vector<8x128xf32>
    %416 = arith.mulf %380, %405 : vector<8x128xf32>
    %417 = arith.addf %415, %416 : vector<8x128xf32>
    %418 = arith.mulf %377, %402 : vector<8x128xf32>
    %419 = arith.mulf %380, %408 : vector<8x128xf32>
    %420 = arith.addf %418, %419 : vector<8x128xf32>
    %421 = arith.mulf %383, %399 : vector<8x128xf32>
    %422 = arith.mulf %386, %405 : vector<8x128xf32>
    %423 = arith.addf %421, %422 : vector<8x128xf32>
    %424 = arith.mulf %383, %402 : vector<8x128xf32>
    %425 = arith.mulf %386, %408 : vector<8x128xf32>
    %426 = arith.addf %424, %425 : vector<8x128xf32>
    %427 = arith.mulf %377, %411 : vector<8x128xf32>
    %428 = arith.mulf %380, %414 : vector<8x128xf32>
    %429 = arith.addf %427, %428 : vector<8x128xf32>
    %430 = arith.addf %429, %390 : vector<8x128xf32>
    %431 = arith.mulf %383, %411 : vector<8x128xf32>
    %432 = arith.mulf %386, %414 : vector<8x128xf32>
    %433 = arith.addf %431, %432 : vector<8x128xf32>
    %434 = arith.addf %433, %394 : vector<8x128xf32>
    %c0_154 = arith.constant 0 : index
    %c0_155 = arith.constant 0 : index
    %435 = vector.load %arg3[%c0_154, %c0_155] : memref<8x2xf32, #tpu.memory_space<vmem>>, vector<8x1xf32>
    %c0_156 = arith.constant 0 : index
    %c1_157 = arith.constant 1 : index
    %436 = vector.load %arg3[%c0_156, %c1_157] : memref<8x2xf32, #tpu.memory_space<vmem>>, vector<8x1xf32>
    %437 = vector.broadcast %435 : vector<8x1xf32> to vector<8x128xf32>
    %438 = arith.mulf %417, %437 : vector<8x128xf32>
    %439 = vector.broadcast %436 : vector<8x1xf32> to vector<8x128xf32>
    %440 = arith.mulf %420, %439 : vector<8x128xf32>
    %441 = arith.addf %438, %440 : vector<8x128xf32>
    %442 = arith.addf %441, %430 : vector<8x128xf32>
    %c0_158 = arith.constant 0 : index
    %c0_159 = arith.constant 0 : index
    %443 = vector.load %arg4[%c0_158, %c0_159] : memref<8x128xf32, #tpu.memory_space<vmem>>, vector<8x128xf32>
    tpu.vector_store %arg4[%c0_158, %c0_159], %442 {strides = array<i32>} : memref<8x128xf32, #tpu.memory_space<vmem>>, vector<8x128xf32>,
    %444 = vector.broadcast %435 : vector<8x1xf32> to vector<8x128xf32>
    %445 = arith.mulf %423, %444 : vector<8x128xf32>
    %446 = vector.broadcast %436 : vector<8x1xf32> to vector<8x128xf32>
    %447 = arith.mulf %426, %446 : vector<8x128xf32>
    %448 = arith.addf %445, %447 : vector<8x128xf32>
    %449 = arith.addf %448, %434 : vector<8x128xf32>
    %c0_160 = arith.constant 0 : index
    %c0_161 = arith.constant 0 : index
    %450 = vector.load %arg5[%c0_160, %c0_161] : memref<8x128xf32, #tpu.memory_space<vmem>>, vector<8x128xf32>
    tpu.vector_store %arg5[%c0_160, %c0_161], %449 {strides = array<i32>} : memref<8x128xf32, #tpu.memory_space<vmem>>, vector<8x128xf32>,
    %c0_162 = arith.constant 0 : index
    %c0_163 = arith.constant 0 : index
    %451 = vector.load %arg6[%c0_162, %c0_163] : memref<8x128xf32, #tpu.memory_space<vmem>>, vector<8x128xf32>
    tpu.vector_store %arg6[%c0_162, %c0_163], %193 {strides = array<i32>} : memref<8x128xf32, #tpu.memory_space<vmem>>, vector<8x128xf32>,
    return
  }
  func.func @transform_0(%arg0: i32) -> (i32, i32) {
    %c0_i32 = arith.constant 0 : i32
    %c0_i32_0 = arith.constant 0 : i32
    %c0_i32_1 = arith.constant 0 : i32
    return %c0_i32, %c0_i32_0 : i32, i32
  }
  func.func @transform_1(%arg0: i32) -> (i32, i32) {
    %c0_i32 = arith.constant 0 : i32
    %c0_i32_0 = arith.constant 0 : i32
    return %arg0, %c0_i32 : i32, i32
  }
  func.func @transform_2(%arg0: i32) -> (i32, i32) {
    %c0_i32 = arith.constant 0 : i32
    %c0_i32_0 = arith.constant 0 : i32
    return %arg0, %c0_i32 : i32, i32
  }
  func.func @transform_3(%arg0: i32) -> (i32, i32) {
    %c0_i32 = arith.constant 0 : i32
    %c0_i32_0 = arith.constant 0 : i32
    return %arg0, %c0_i32 : i32, i32
  }
  func.func @transform_4(%arg0: i32) -> (i32, i32) {
    %c0_i32 = arith.constant 0 : i32
    %c0_i32_0 = arith.constant 0 : i32
    return %arg0, %c0_i32 : i32, i32
  }
  func.func @transform_5(%arg0: i32) -> (i32, i32) {
    %c0_i32 = arith.constant 0 : i32
    %c0_i32_0 = arith.constant 0 : i32
    return %arg0, %c0_i32 : i32, i32
  }
}

</mosaic_0001>

<llo_original>
// kernel: parallel_ifs_forward.1
$region0: #{parallel_ifs_forward.1}
  #allocation0 [shape = 'u32[]', space=smem, size = 0x4, offset = 0x4, fixed_abs, tag = 'smem constant byte address 0x4 - core index']
  #allocation1 [shape = 'u32[144,128]{1,0:T(1,128)}', space=vmem, size = 0x12000, scoped, tag = 'internal scratch']
  %s0 = inlined_call_operand.vmem [shape: f32[6,8], index: 0, kind: input, shape index: {}]
  %s1 = inlined_call_operand.vmem [shape: s32[8,128], index: 1, kind: input, shape index: {}]
  %s2 = inlined_call_operand.vmem [shape: f32[8,2], index: 2, kind: input, shape index: {}]
  %s3 = inlined_call_operand.vmem [shape: f32[8,128], index: 3, kind: output, shape index: {0}]
  %s4 = inlined_call_operand.vmem [shape: f32[8,128], index: 4, kind: output, shape index: {1}]
  %s5 = inlined_call_operand.vmem [shape: f32[8,128], index: 5, kind: output, shape index: {2}]
  %6 = xla_tuple %s3, %s4, %s5
  %s7 = sld [smem:[#allocation0]]
  $region42: #{parallel_ifs_forward.1} parent=0
    _
  %s9 = ssub.s32 1, %s7
  %s10 = scalar_select 0, %s9, %s7
  $region1: #{parallel_ifs_forward.1} parent=0
    #allocation2 [shape = 'u8[4096]{0}', space=smem, size = 0x1000, scoped, tag = 'input window, operand 0, single buffered']
    #allocation3 [shape = 's32[1]{0}', space=sflag, size = 0x4, scoped, tag = 'scoped memory for parallel_ifs_forward.1']
    %11 = vsyncpa [#allocation3], 0
    // Predicated region
    $region2: #{parallel_ifs_forward.1} parent=1 // pred_check
      _
    $region3: #{parallel_ifs_forward.1} parent=1 // pred_check_branch
      %13 = sbr.rel (0) target = $region5
    $region4: #{parallel_ifs_forward.1} parent=1 // pred_region
      %s15 = ssub.s32 128, 128
      %16 = vsyncadd [#allocation3], %s15
      %s18 = sshll.u32 %s0, 4
      %s19 = int_to_ptr.vmem [resolvable:$true] %s18
      %21 = dma.vmem_to_smem %s19, 128, [#allocation2], [#allocation3]
    $region5: #{parallel_ifs_forward.1} parent=1 // pred_fallthru
      _
    // Predicated region
    $region6: #{parallel_ifs_forward.1} parent=1 // pred_check
      _
    $region7: #{parallel_ifs_forward.1} parent=1 // pred_check_branch
      %23 = sbr.rel (0) target = $region9
    $region8: #{parallel_ifs_forward.1} parent=1 // pred_region
      _
    $region9: #{parallel_ifs_forward.1} parent=1 // pred_fallthru
      _
    // Predicated region
    $region10: #{parallel_ifs_forward.1} parent=1 // pred_check
      _
    $region11: #{parallel_ifs_forward.1} parent=1 // pred_check_branch
      %25 = sbr.rel (0) target = $region13
    $region12: #{parallel_ifs_forward.1} parent=1 // pred_region
      _
    $region13: #{parallel_ifs_forward.1} parent=1 // pred_fallthru
      _
    // Predicated region
    $region14: #{parallel_ifs_forward.1} parent=1 // pred_check
      _
    $region15: #{parallel_ifs_forward.1} parent=1 // pred_check_branch
      %27 = sbr.rel (0) target = $region17
    $region16: #{parallel_ifs_forward.1} parent=1 // pred_region
      %28 = dma.done [#allocation3], 128
    $region17: #{parallel_ifs_forward.1} parent=1 // pred_fallthru
      _
    %29 = sfence
    %v30 = vld [vmem:[%s1] sm:$0xff]
    %vm31 = vcmp.eq.s32.totalorder %v30, 0
    %v32 = vsel %vm31, 1, 0
    %v33 = vcvt.s32.f32 %v32
    %s34 = sld [smem:[#allocation2]]
    %v35 = vstv %s34
    %v36 = vmul.f32 %v33, %v35
    %v37 = vadd.f32 %v36, 0.0
    %s38 = sld [smem:[#allocation2 + $0x1]]
    %v39 = vstv %s38
    %v40 = vmul.f32 %v33, %v39
    %v41 = vadd.f32 %v40, 0.0
    %s42 = sld [smem:[#allocation2 + $0x2]]
    %v43 = vstv %s42
    %v44 = vmul.f32 %v33, %v43
    %v45 = vadd.f32 %v44, 0.0
    %s46 = sld [smem:[#allocation2 + $0x3]]
    %v47 = vstv %s46
    %v48 = vmul.f32 %v33, %v47
    %v49 = vadd.f32 %v48, 0.0
    %s50 = sld [smem:[#allocation2 + $0x4]]
    %v51 = vstv %s50
    %v52 = vmul.f32 %v33, %v51
    %v53 = vadd.f32 %v52, 0.0
    %s54 = sld [smem:[#allocation2 + $0x5]]
    %v55 = vstv %s54
    %v56 = vmul.f32 %v33, %v55
    %v57 = vadd.f32 %v56, 0.0
    %s58 = sld [smem:[#allocation2 + $0x6]]
    %v59 = vstv %s58
    %v60 = vmul.f32 %v33, %v59
    %v61 = vadd.f32 %v60, 0.0
    %vm62 = vcmp.eq.s32.totalorder %v30, 1
    %v63 = vsel %vm62, 1, 0
    %v64 = vcvt.s32.f32 %v63
    %s65 = sld [smem:[#allocation2 + $0x80]]
    %v66 = vstv %s65
    %v67 = vmul.f32 %v64, %v66
    %v68 = vadd.f32 %v37, %v67
    %s69 = sld [smem:[#allocation2 + $0x81]]
    %v70 = vstv %s69
    %v71 = vmul.f32 %v64, %v70
    %v72 = vadd.f32 %v41, %v71
    %s73 = sld [smem:[#allocation2 + $0x82]]
    %v74 = vstv %s73
    %v75 = vmul.f32 %v64, %v74
    %v76 = vadd.f32 %v45, %v75
    %s77 = sld [smem:[#allocation2 + $0x83]]
    %v78 = vstv %s77
    %v79 = vmul.f32 %v64, %v78
    %v80 = vadd.f32 %v49, %v79
    %s81 = sld [smem:[#allocation2 + $0x84]]
    %v82 = vstv %s81
    %v83 = vmul.f32 %v64, %v82
    %v84 = vadd.f32 %v53, %v83
    %s85 = sld [smem:[#allocation2 + $0x85]]
    %v86 = vstv %s85
    %v87 = vmul.f32 %v64, %v86
    %v88 = vadd.f32 %v57, %v87
    %s89 = sld [smem:[#allocation2 + $0x86]]
    %v90 = vstv %s89
    %v91 = vmul.f32 %v64, %v90
    %v92 = vadd.f32 %v61, %v91
    %vm93 = vcmp.eq.s32.totalorder %v30, 2
    %v94 = vsel %vm93, 1, 0
    %v95 = vcvt.s32.f32 %v94
    %s96 = sld [smem:[#allocation2 + $0x100]]
    %v97 = vstv %s96
    %v98 = vmul.f32 %v95, %v97
    %v99 = vadd.f32 %v68, %v98
    %s100 = sld [smem:[#allocation2 + $0x101]]
    %v101 = vstv %s100
    %v102 = vmul.f32 %v95, %v101
    %v103 = vadd.f32 %v72, %v102
    %s104 = sld [smem:[#allocation2 + $0x102]]
    %v105 = vstv %s104
    %v106 = vmul.f32 %v95, %v105
    %v107 = vadd.f32 %v76, %v106
    %s108 = sld [smem:[#allocation2 + $0x103]]
    %v109 = vstv %s108
    %v110 = vmul.f32 %v95, %v109
    %v111 = vadd.f32 %v80, %v110
    %s112 = sld [smem:[#allocation2 + $0x104]]
    %v113 = vstv %s112
    %v114 = vmul.f32 %v95, %v113
    %v115 = vadd.f32 %v84, %v114
    %s116 = sld [smem:[#allocation2 + $0x105]]
    %v117 = vstv %s116
    %v118 = vmul.f32 %v95, %v117
    %v119 = vadd.f32 %v88, %v118
    %s120 = sld [smem:[#allocation2 + $0x106]]
    %v121 = vstv %s120
    %v122 = vmul.f32 %v95, %v121
    %v123 = vadd.f32 %v92, %v122
    %vm124 = vcmp.eq.s32.totalorder %v30, 3
    %v125 = vsel %vm124, 1, 0
    %v126 = vcvt.s32.f32 %v125
    %s127 = sld [smem:[#allocation2 + $0x180]]
    %v128 = vstv %s127
    %v129 = vmul.f32 %v126, %v128
    %v130 = vadd.f32 %v99, %v129
    %s131 = sld [smem:[#allocation2 + $0x181]]
    %v132 = vstv %s131
    %v133 = vmul.f32 %v126, %v132
    %v134 = vadd.f32 %v103, %v133
    %s135 = sld [smem:[#allocation2 + $0x182]]
    %v136 = vstv %s135
    %v137 = vmul.f32 %v126, %v136
    %v138 = vadd.f32 %v107, %v137
    %s139 = sld [smem:[#allocation2 + $0x183]]
    %v140 = vstv %s139
    %v141 = vmul.f32 %v126, %v140
    %v142 = vadd.f32 %v111, %v141
    %s143 = sld [smem:[#allocation2 + $0x184]]
    %v144 = vstv %s143
    %v145 = vmul.f32 %v126, %v144
    %v146 = vadd.f32 %v115, %v145
    %s147 = sld [smem:[#allocation2 + $0x185]]
    %v148 = vstv %s147
    %v149 = vmul.f32 %v126, %v148
    %v150 = vadd.f32 %v119, %v149
    %s151 = sld [smem:[#allocation2 + $0x186]]
    %v152 = vstv %s151
    %v153 = vmul.f32 %v126, %v152
    %v154 = vadd.f32 %v123, %v153
    %vm155 = vcmp.eq.s32.totalorder %v30, 4
    %v156 = vsel %vm155, 1, 0
    %v157 = vcvt.s32.f32 %v156
    %s158 = sld [smem:[#allocation2 + $0x200]]
    %v159 = vstv %s158
    %v160 = vmul.f32 %v157, %v159
    %v161 = vadd.f32 %v130, %v160
    %s162 = sld [smem:[#allocation2 + $0x201]]
    %v163 = vstv %s162
    %v164 = vmul.f32 %v157, %v163
    %v165 = vadd.f32 %v134, %v164
    %s166 = sld [smem:[#allocation2 + $0x202]]
    %v167 = vstv %s166
    %v168 = vmul.f32 %v157, %v167
    %v169 = vadd.f32 %v138, %v168
    %s170 = sld [smem:[#allocation2 + $0x203]]
    %v171 = vstv %s170
    %v172 = vmul.f32 %v157, %v171
    %v173 = vadd.f32 %v142, %v172
    %s174 = sld [smem:[#allocation2 + $0x204]]
    %v175 = vstv %s174
    %v176 = vmul.f32 %v157, %v175
    %v177 = vadd.f32 %v146, %v176
    %s178 = sld [smem:[#allocation2 + $0x205]]
    %v179 = vstv %s178
    %v180 = vmul.f32 %v157, %v179
    %v181 = vadd.f32 %v150, %v180
    %s182 = sld [smem:[#allocation2 + $0x206]]
    %v183 = vstv %s182
    %v184 = vmul.f32 %v157, %v183
    %v185 = vadd.f32 %v154, %v184
    %vm186 = vcmp.eq.s32.totalorder %v30, 5
    %v187 = vsel %vm186, 1, 0
    %v188 = vcvt.s32.f32 %v187
    %s189 = sld [smem:[#allocation2 + $0x280]]
    %v190 = vstv %s189
    %v191 = vmul.f32 %v188, %v190
    %v192 = vadd.f32 %v161, %v191
    %s193 = sld [smem:[#allocation2 + $0x281]]
    %v194 = vstv %s193
    %v195 = vmul.f32 %v188, %v194
    %v196 = vadd.f32 %v165, %v195
    %s197 = sld [smem:[#allocation2 + $0x282]]
    %v198 = vstv %s197
    %v199 = vmul.f32 %v188, %v198
    %v200 = vadd.f32 %v169, %v199
    %s201 = sld [smem:[#allocation2 + $0x283]]
    %v202 = vstv %s201
    %v203 = vmul.f32 %v188, %v202
    %v204 = vadd.f32 %v173, %v203
    %s205 = sld [smem:[#allocation2 + $0x284]]
    %v206 = vstv %s205
    %v207 = vmul.f32 %v188, %v206
    %v208 = vadd.f32 %v177, %v207
    %s209 = sld [smem:[#allocation2 + $0x285]]
    %v210 = vstv %s209
    %v211 = vmul.f32 %v188, %v210
    %v212 = vadd.f32 %v181, %v211
    %s213 = sld [smem:[#allocation2 + $0x286]]
    %v214 = vstv %s213
    %v215 = vmul.f32 %v188, %v214
    %v216 = vadd.f32 %v185, %v215
    %v217 = vlaneseq
    %v218 = vand.u32 %v217, 127
    %vm219 = vcmp.ge.s32.totalorder %v218, 1
    %220 = vrot.lane.b32.xlu0 %v192, 1
    %v221 = vpop.permute.xlu0 %220
    %v222 = vsel %vm219, %v221, 1.0
    %223 = vrot.lane.b32.xlu0 %v196, 1
    %v224 = vpop.permute.xlu0 %223
    %v225 = vsel %vm219, %v224, 0.0
    %226 = vrot.lane.b32.xlu0 %v200, 1
    %v227 = vpop.permute.xlu0 %226
    %v228 = vsel %vm219, %v227, 0.0
    %229 = vrot.lane.b32.xlu0 %v204, 1
    %v230 = vpop.permute.xlu0 %229
    %v231 = vsel %vm219, %v230, 1.0
    %232 = vrot.lane.b32.xlu0 %v208, 1
    %v233 = vpop.permute.xlu0 %232
    %v234 = vsel %vm219, %v233, 0.0
    %235 = vrot.lane.b32.xlu0 %v212, 1
    %v236 = vpop.permute.xlu0 %235
    %v237 = vsel %vm219, %v236, 0.0
    %v238 = vmul.f32 %v192, %v222
    %v239 = vmul.f32 %v196, %v228
    %v240 = vadd.f32 %v238, %v239
    %v241 = vmul.f32 %v192, %v225
    %v242 = vmul.f32 %v196, %v231
    %v243 = vadd.f32 %v241, %v242
    %v244 = vmul.f32 %v200, %v222
    %v245 = vmul.f32 %v204, %v228
    %v246 = vadd.f32 %v244, %v245
    %v247 = vmul.f32 %v200, %v225
    %v248 = vmul.f32 %v204, %v231
    %v249 = vadd.f32 %v247, %v248
    %v250 = vmul.f32 %v192, %v234
    %v251 = vmul.f32 %v196, %v237
    %v252 = vadd.f32 %v250, %v251
    %v253 = vadd.f32 %v252, %v208
    %v254 = vmul.f32 %v200, %v234
    %v255 = vmul.f32 %v204, %v237
    %v256 = vadd.f32 %v254, %v255
    %v257 = vadd.f32 %v256, %v212
    %vm258 = vcmp.ge.s32.totalorder %v218, 2
    %259 = vrot.lane.b32.xlu0 %v240, 2
    %v260 = vpop.permute.xlu0 %259
    %v261 = vsel %vm258, %v260, 1.0
    %262 = vrot.lane.b32.xlu0 %v243, 2
    %v263 = vpop.permute.xlu0 %262
    %v264 = vsel %vm258, %v263, 0.0
    %265 = vrot.lane.b32.xlu0 %v246, 2
    %v266 = vpop.permute.xlu0 %265
    %v267 = vsel %vm258, %v266, 0.0
    %268 = vrot.lane.b32.xlu0 %v249, 2
    %v269 = vpop.permute.xlu0 %268
    %v270 = vsel %vm258, %v269, 1.0
    %271 = vrot.lane.b32.xlu0 %v253, 2
    %v272 = vpop.permute.xlu0 %271
    %v273 = vsel %vm258, %v272, 0.0
    %274 = vrot.lane.b32.xlu0 %v257, 2
    %v275 = vpop.permute.xlu0 %274
    %v276 = vsel %vm258, %v275, 0.0
    %v277 = vmul.f32 %v240, %v261
    %v278 = vmul.f32 %v243, %v267
    %v279 = vadd.f32 %v277, %v278
    %v280 = vmul.f32 %v240, %v264
    %v281 = vmul.f32 %v243, %v270
    %v282 = vadd.f32 %v280, %v281
    %v283 = vmul.f32 %v246, %v261
    %v284 = vmul.f32 %v249, %v267
    %v285 = vadd.f32 %v283, %v284
    %v286 = vmul.f32 %v246, %v264
    %v287 = vmul.f32 %v249, %v270
    %v288 = vadd.f32 %v286, %v287
    %v289 = vmul.f32 %v240, %v273
    %v290 = vmul.f32 %v243, %v276
    %v291 = vadd.f32 %v289, %v290
    %v292 = vadd.f32 %v291, %v253
    %v293 = vmul.f32 %v246, %v273
    %v294 = vmul.f32 %v249, %v276
    %v295 = vadd.f32 %v293, %v294
    %v296 = vadd.f32 %v295, %v257
    %vm297 = vcmp.ge.s32.totalorder %v218, 4
    %298 = vrot.lane.b32.xlu0 %v279, 4
    %v299 = vpop.permute.xlu0 %298
    %v300 = vsel %vm297, %v299, 1.0
    %301 = vrot.lane.b32.xlu0 %v282, 4
    %v302 = vpop.permute.xlu0 %301
    %v303 = vsel %vm297, %v302, 0.0
    %304 = vrot.lane.b32.xlu0 %v285, 4
    %v305 = vpop.permute.xlu0 %304
    %v306 = vsel %vm297, %v305, 0.0
    %307 = vrot.lane.b32.xlu0 %v288, 4
    %v308 = vpop.permute.xlu0 %307
    %v309 = vsel %vm297, %v308, 1.0
    %310 = vrot.lane.b32.xlu0 %v292, 4
    %v311 = vpop.permute.xlu0 %310
    %v312 = vsel %vm297, %v311, 0.0
    %313 = vrot.lane.b32.xlu0 %v296, 4
    %v314 = vpop.permute.xlu0 %313
    %v315 = vsel %vm297, %v314, 0.0
    %v316 = vmul.f32 %v279, %v300
    %v317 = vmul.f32 %v282, %v306
    %v318 = vadd.f32 %v316, %v317
    %v319 = vmul.f32 %v279, %v303
    %v320 = vmul.f32 %v282, %v309
    %v321 = vadd.f32 %v319, %v320
    %v322 = vmul.f32 %v285, %v300
    %v323 = vmul.f32 %v288, %v306
    %v324 = vadd.f32 %v322, %v323
    %v325 = vmul.f32 %v285, %v303
    %v326 = vmul.f32 %v288, %v309
    %v327 = vadd.f32 %v325, %v326
    %v328 = vmul.f32 %v279, %v312
    %v329 = vmul.f32 %v282, %v315
    %v330 = vadd.f32 %v328, %v329
    %v331 = vadd.f32 %v330, %v292
    %v332 = vmul.f32 %v285, %v312
    %v333 = vmul.f32 %v288, %v315
    %v334 = vadd.f32 %v332, %v333
    %v335 = vadd.f32 %v334, %v296
    %vm336 = vcmp.ge.s32.totalorder %v218, 8
    %337 = vrot.lane.b32.xlu0 %v318, 8
    %v338 = vpop.permute.xlu0 %337
    %v339 = vsel %vm336, %v338, 1.0
    %340 = vrot.lane.b32.xlu0 %v321, 8
    %v341 = vpop.permute.xlu0 %340
    %v342 = vsel %vm336, %v341, 0.0
    %343 = vrot.lane.b32.xlu0 %v324, 8
    %v344 = vpop.permute.xlu0 %343
    %v345 = vsel %vm336, %v344, 0.0
    %346 = vrot.lane.b32.xlu0 %v327, 8
    %v347 = vpop.permute.xlu0 %346
    %v348 = vsel %vm336, %v347, 1.0
    %349 = vrot.lane.b32.xlu0 %v331, 8
    %v350 = vpop.permute.xlu0 %349
    %v351 = vsel %vm336, %v350, 0.0
    %352 = vrot.lane.b32.xlu0 %v335, 8
    %v353 = vpop.permute.xlu0 %352
    %v354 = vsel %vm336, %v353, 0.0
    %v355 = vmul.f32 %v318, %v339
    %v356 = vmul.f32 %v321, %v345
    %v357 = vadd.f32 %v355, %v356
    %v358 = vmul.f32 %v318, %v342
    %v359 = vmul.f32 %v321, %v348
    %v360 = vadd.f32 %v358, %v359
    %v361 = vmul.f32 %v324, %v339
    %v362 = vmul.f32 %v327, %v345
    %v363 = vadd.f32 %v361, %v362
    %v364 = vmul.f32 %v324, %v342
    %v365 = vmul.f32 %v327, %v348
    %v366 = vadd.f32 %v364, %v365
    %v367 = vmul.f32 %v318, %v351
    %v368 = vmul.f32 %v321, %v354
    %v369 = vadd.f32 %v367, %v368
    %v370 = vadd.f32 %v369, %v331
    %v371 = vmul.f32 %v324, %v351
    %v372 = vmul.f32 %v327, %v354
    %v373 = vadd.f32 %v371, %v372
    %v374 = vadd.f32 %v373, %v335
    %vm375 = vcmp.ge.s32.totalorder %v218, 16
    %376 = vrot.lane.b32.xlu0 %v357, 16
    %v377 = vpop.permute.xlu0 %376
    %v378 = vsel %vm375, %v377, 1.0
    %379 = vrot.lane.b32.xlu0 %v360, 16
    %v380 = vpop.permute.xlu0 %379
    %v381 = vsel %vm375, %v380, 0.0
    %382 = vrot.lane.b32.xlu0 %v363, 16
    %v383 = vpop.permute.xlu0 %382
    %v384 = vsel %vm375, %v383, 0.0
    %385 = vrot.lane.b32.xlu0 %v366, 16
    %v386 = vpop.permute.xlu0 %385
    %v387 = vsel %vm375, %v386, 1.0
    %388 = vrot.lane.b32.xlu0 %v370, 16
    %v389 = vpop.permute.xlu0 %388
    %v390 = vsel %vm375, %v389, 0.0
    %391 = vrot.lane.b32.xlu0 %v374, 16
    %v392 = vpop.permute.xlu0 %391
    %v393 = vsel %vm375, %v392, 0.0
    %v394 = vmul.f32 %v357, %v378
    %v395 = vmul.f32 %v360, %v384
    %v396 = vadd.f32 %v394, %v395
    %v397 = vmul.f32 %v357, %v381
    %v398 = vmul.f32 %v360, %v387
    %v399 = vadd.f32 %v397, %v398
    %v400 = vmul.f32 %v363, %v378
    %v401 = vmul.f32 %v366, %v384
    %v402 = vadd.f32 %v400, %v401
    %v403 = vmul.f32 %v363, %v381
    %v404 = vmul.f32 %v366, %v387
    %v405 = vadd.f32 %v403, %v404
    %v406 = vmul.f32 %v357, %v390
    %v407 = vmul.f32 %v360, %v393
    %v408 = vadd.f32 %v406, %v407
    %v409 = vadd.f32 %v408, %v370
    %v410 = vmul.f32 %v363, %v390
    %v411 = vmul.f32 %v366, %v393
    %v412 = vadd.f32 %v410, %v411
    %v413 = vadd.f32 %v412, %v374
    %vm414 = vcmp.ge.s32.totalorder %v218, 32
    %415 = vrot.lane.b32.xlu0 %v396, 32
    %v416 = vpop.permute.xlu0 %415
    %v417 = vsel %vm414, %v416, 1.0
    %418 = vrot.lane.b32.xlu0 %v399, 32
    %v419 = vpop.permute.xlu0 %418
    %v420 = vsel %vm414, %v419, 0.0
    %421 = vrot.lane.b32.xlu0 %v402, 32
    %v422 = vpop.permute.xlu0 %421
    %v423 = vsel %vm414, %v422, 0.0
    %424 = vrot.lane.b32.xlu0 %v405, 32
    %v425 = vpop.permute.xlu0 %424
    %v426 = vsel %vm414, %v425, 1.0
    %427 = vrot.lane.b32.xlu0 %v409, 32
    %v428 = vpop.permute.xlu0 %427
    %v429 = vsel %vm414, %v428, 0.0
    %430 = vrot.lane.b32.xlu0 %v413, 32
    %v431 = vpop.permute.xlu0 %430
    %v432 = vsel %vm414, %v431, 0.0
    %v433 = vmul.f32 %v396, %v417
    %v434 = vmul.f32 %v399, %v423
    %v435 = vadd.f32 %v433, %v434
    %v436 = vmul.f32 %v396, %v420
    %v437 = vmul.f32 %v399, %v426
    %v438 = vadd.f32 %v436, %v437
    %v439 = vmul.f32 %v402, %v417
    %v440 = vmul.f32 %v405, %v423
    %v441 = vadd.f32 %v439, %v440
    %v442 = vmul.f32 %v402, %v420
    %v443 = vmul.f32 %v405, %v426
    %v444 = vadd.f32 %v442, %v443
    %v445 = vmul.f32 %v396, %v429
    %v446 = vmul.f32 %v399, %v432
    %v447 = vadd.f32 %v445, %v446
    %v448 = vadd.f32 %v447, %v409
    %v449 = vmul.f32 %v402, %v429
    %v450 = vmul.f32 %v405, %v432
    %v451 = vadd.f32 %v449, %v450
    %v452 = vadd.f32 %v451, %v413
    %v453 = vld [vmem:[%s2] sm:$0xff]
    %455 = vset.pattern.permute.xlu0 0
    %456 = vperm.xlu0 %455, %v453
    %v457 = vpop.permute.xlu0 %456
    %v459 = vmul.f32 %v435, %v457
    %460 = vset.pattern.permute.xlu0 1
    %461 = vperm.xlu0 %460, %v453
    %v462 = vpop.permute.xlu0 %461
    %v464 = vmul.f32 %v438, %v462
    %v465 = vadd.f32 %v459, %v464
    %v466 = vadd.f32 %v465, %v448
    %467 = vst [vmem:[%s3] sm:$0xff] %v466
    %v468 = vmul.f32 %v441, %v457
    %v469 = vmul.f32 %v444, %v462
    %v470 = vadd.f32 %v468, %v469
    %v471 = vadd.f32 %v470, %v452
    %472 = vst [vmem:[%s4] sm:$0xff] %v471
    %473 = vst [vmem:[%s5] sm:$0xff] %v216
    // Predicated region
    $region18: #{parallel_ifs_forward.1} parent=1 // pred_check
      _
    $region19: #{parallel_ifs_forward.1} parent=1 // pred_check_branch
      %475 = sbr.rel (0) target = $region21
    $region20: #{parallel_ifs_forward.1} parent=1 // pred_region
      _
    $region21: #{parallel_ifs_forward.1} parent=1 // pred_fallthru
      _
    // Predicated region
    $region22: #{parallel_ifs_forward.1} parent=1 // pred_check
      _
    $region23: #{parallel_ifs_forward.1} parent=1 // pred_check_branch
      %477 = sbr.rel (0) target = $region25
    $region24: #{parallel_ifs_forward.1} parent=1 // pred_region
      _
    $region25: #{parallel_ifs_forward.1} parent=1 // pred_fallthru
      _
    // Predicated region
    $region26: #{parallel_ifs_forward.1} parent=1 // pred_check
      _
    $region27: #{parallel_ifs_forward.1} parent=1 // pred_check_branch
      %479 = sbr.rel (0) target = $region29
    $region28: #{parallel_ifs_forward.1} parent=1 // pred_region
      _
    $region29: #{parallel_ifs_forward.1} parent=1 // pred_fallthru
      _
    // Predicated region
    $region30: #{parallel_ifs_forward.1} parent=1 // pred_check
      _
    $region31: #{parallel_ifs_forward.1} parent=1 // pred_check_branch
      %481 = sbr.rel (0) target = $region33
    $region32: #{parallel_ifs_forward.1} parent=1 // pred_region
      _
    $region33: #{parallel_ifs_forward.1} parent=1 // pred_fallthru
      _
    // Predicated region
    $region34: #{parallel_ifs_forward.1} parent=1 // pred_check
      _
    $region35: #{parallel_ifs_forward.1} parent=1 // pred_check_branch
      %483 = sbr.rel (0) target = $region37
    $region36: #{parallel_ifs_forward.1} parent=1 // pred_region
      _
    $region37: #{parallel_ifs_forward.1} parent=1 // pred_fallthru
      _
    // Predicated region
    $region38: #{parallel_ifs_forward.1} parent=1 // pred_check
      _
    $region39: #{parallel_ifs_forward.1} parent=1 // pred_check_branch
      %485 = sbr.rel (0) target = $region41
    $region40: #{parallel_ifs_forward.1} parent=1 // pred_region
      _
    $region41: #{parallel_ifs_forward.1} parent=1 // pred_fallthru
      _
    %486 = vsyncpa [#allocation3], 1

</llo_original>
